<compile_context>
chip_gen: v5e
topology: v5e:2x2
jax: 0.10.0
libtpu: 0.0.40
codegen_flags: <defaults>
</compile_context>

<pallas_src>
import jax
import jax.numpy as jnp
from jax.experimental import pallas as pl
from jax.experimental.pallas import tpu as pltpu


def _mish(x):
    # mish(x) = x * tanh(softplus(x)).  With s = 1 + exp(x):
    #   tanh(log(s)) = (s^2 - 1) / (s^2 + 1)   -> one EUP exp per element.
    # Clamp at 20: for x > 20 the ratio rounds to exactly 1.0 in f32 (mish(x) ~= x).
    e = jnp.exp(jnp.minimum(x, 20.0))
    s = 1.0 + e
    s2 = s * s
    return x * (s2 - 1.0) / (s2 + 1.0)


def critic_mlp_kernel(x_ref, w1_ref, b1_ref, w2_ref, b2_ref, w3_ref, b3_ref, o_ref):
    x = x_ref[...]

    # Layer 1: Linear + Mish (MXU matmul, f32 accumulation; Mish on the f32 acc).
    h = jnp.dot(x, w1_ref[...], preferred_element_type=jnp.float32) + b1_ref[...]
    h = _mish(h)

    # Layer 2: Linear + Mish.  Cast activations to the weight dtype (no-op in f32
    # mode, bf16 in the low-precision path) so the MXU runs single-pass.
    h = jnp.dot(h.astype(w2_ref.dtype), w2_ref[...],
                preferred_element_type=jnp.float32) + b2_ref[...]
    h = _mish(h)

    # Output layer (out_dim == 1, Identity): contract the hidden dim of the (1, H2p)
    # weight row against the hidden dim of h on the MXU -> lane-dense (1, TB) result
    # (no (TB,1)->(1,TB) relayout, no masked partial stores).
    q = jax.lax.dot_general(
        w3_ref[...], h,
        dimension_numbers=(((1,), (1,)), ((), ())),
        preferred_element_type=jnp.float32) + b3_ref[...]

    o_ref[...] = q.reshape(o_ref.shape).astype(o_ref.dtype)


def _round_up(x, m):
    return (x + m - 1) // m * m


def _cdiv(a, b):
    return -(-a // b)


def _pad_axis(a, axis, new_size):
    pad = new_size - a.shape[axis]
    if pad <= 0:
        return a
    widths = [(0, 0)] * a.ndim
    widths[axis] = (0, pad)
    return jnp.pad(a, widths)


def _vmem_cap_bytes():
    # Use ~3/4 of physical per-core VMEM when queryable (96 MiB on v5e/v6e, 48 MiB on
    # v7x); fall back to 48 MiB, which is safe on every generation.
    try:
        phys = int(pltpu.get_tpu_info().vmem_capacity_bytes)
    except Exception:
        phys = 64 << 20
    return int(min(phys * 3 // 4, 112 << 20))


def critic_obs_forward(cond, params, *, row_tile=4096, use_bf16=False):
    """Pallas-backed CriticObs.forward.

    cond: dict with 'state' of shape (B, To, Do), or array (B, num_feature).
    params: dict of w1,b1,w2,b2,w3,b3 with layouts documented above.
    """
    if isinstance(cond, dict):
        state = cond["state"]
        B = state.shape[0]
        state = state.reshape(B, -1)  # view(B, -1)
    else:
        state = cond
        B = state.shape[0]

    out_dtype = state.dtype

    w1, b1 = params["w1"], params["b1"]
    w2, b2 = params["w2"], params["b2"]
    w3, b3 = params["w3"], params["b3"]

    D0 = state.shape[1]
    H1, H2 = w1.shape[1], w2.shape[1]
    # Keep hidden padding at 128 (one full lane vreg).  Padding to 256 to "fill" the
    # wide MXU would only double Mish/EUP work and activation VMEM for zero gain.
    H1p, H2p = _round_up(H1, 128), _round_up(H2, 128)

    # Zero-pad hidden widths (exact: mish(0) == 0, zero rows/cols contribute nothing).
    w1p = _pad_axis(w1, 1, H1p)
    b1p = _pad_axis(b1.reshape(1, H1), 1, H1p)
    w2p = _pad_axis(_pad_axis(w2, 0, H1p), 1, H2p)
    b2p = _pad_axis(b2.reshape(1, H2), 1, H2p)
    w3p = _pad_axis(w3.reshape(1, H2), 1, H2p)   # (1, H2p) row, contracted on the MXU
    b3p = b3.reshape(1, 1)

    if use_bf16:
        # Memory-bound large-B path: bf16 state / layer weights, f32 accumulation,
        # Mish on f32, f32 output.  ~1e-3 relative accuracy.
        state = state.astype(jnp.bfloat16)
        w1p = w1p.astype(jnp.bfloat16)
        w2p = w2p.astype(jnp.bfloat16)

    x_item = jnp.dtype(state.dtype).itemsize
    w_item = jnp.dtype(w1p.dtype).itemsize

    # ---- VMEM-budgeted batch tiling (lane/sublane-padded footprint) -------------
    d0p = _round_up(D0, 128)                     # state block pads its lane dim to 128
    cap = _vmem_cap_bytes()
    headroom = 4 << 20                           # compiler-internal scratch headroom
    acts_per_row = (H1p + H2p) * (4 + x_item)    # f32 h1/h2 + dtype-cast copies
    per_row = (2 * d0p * x_item                  # state block, double-buffered
               + 2 * 8 * 4                       # (1,1,TB) out block, sublane-padded, x2
               + acts_per_row)
    fixed = (2 * (d0p * H1p + H1p * H2p) * w_item            # weights, double-buffered
             + 2 * 8 * (H1p + 2 * H2p + 128) * 4)            # biases + w3 row
    budget = max(cap - headroom - fixed, 1 << 20)
    tb_cap = int(max(min(row_tile, budget // per_row), 8))

    if B <= tb_cap:
        TB, num_tiles = B, 1
    else:
        # Even number of near-equal tiles so v7x's two TensorCores (grid axis marked
        # "parallel") each take half the rows; TB multiple of 8 (sublane).
        n = _cdiv(B, tb_cap)
        if n % 2:
            n += 1
        TB = _round_up(_cdiv(B, n), 8)
        num_tiles = _cdiv(B, TB)

    vmem_limit = int(min(max(TB * per_row + fixed + headroom, 8 << 20), cap))

    def resident(shape):
        return pl.BlockSpec(shape, lambda i, _s=len(shape): (0,) * _s)

    out = pl.pallas_call(
        critic_mlp_kernel,
        out_shape=jax.ShapeDtypeStruct((num_tiles, 1, TB), out_dtype),
        grid=(num_tiles,),
        in_specs=[
            pl.BlockSpec((TB, D0), lambda i: (i, 0)),   # state, tiled over rows
            resident((D0, H1p)), resident((1, H1p)),    # layer 1 params (resident)
            resident((H1p, H2p)), resident((1, H2p)),   # layer 2 params (resident)
            resident((1, H2p)), resident((1, 1)),       # output layer params (resident)
        ],
        out_specs=pl.BlockSpec((1, 1, TB), lambda i: (i, 0, 0)),   # lane-dense output
        compiler_params=pltpu.CompilerParams(
            dimension_semantics=("parallel",),
            vmem_limit_bytes=vmem_limit,
        ),
    )(state, w1p, b1p, w2p, b2p, w3p, b3p)

    # (num_tiles, 1, TB) -> (B, 1); padded tail columns of the last tile are dropped.
    return out.reshape(num_tiles * TB, 1)[:B]


def init_critic_params(key, cond_dim, mlp_dims):
    """Deterministic init matching MLP([cond_dim] + mlp_dims + [1]) shapes.

    Mirrors PyTorch Linear default init: U(-1/sqrt(fan_in), 1/sqrt(fan_in)).
    """
    dims = [cond_dim] + list(mlp_dims) + [1]
    params = {}
    keys = jax.random.split(key, 2 * (len(dims) - 1))
    for li in range(len(dims) - 1):
        fan_in, fan_out = dims[li], dims[li + 1]
        bound = 1.0 / (fan_in ** 0.5)
        w = jax.random.uniform(keys[2 * li], (fan_in, fan_out), jnp.float32, -bound, bound)
        b = jax.random.uniform(keys[2 * li + 1], (1, fan_out), jnp.float32, -bound, bound)
        params[f"w{li + 1}"] = w
        params[f"b{li + 1}"] = b
    return params


if __name__ == "__main__":
    # Shapes consistent with the module's forward:
    #   cond['state']: (B, To, Do) = (2, 4, 8) -> cond_dim = 32; mlp_dims = [64, 64]
    B, To, Do = 2, 4, 8
    cond_dim = To * Do
    mlp_dims = [64, 64]

    key = jax.random.PRNGKey(0)
    k_state, k_params, k_big = jax.random.split(key, 3)

    state = jax.random.normal(k_state, (B, To, Do), dtype=jnp.float32)
    params = init_critic_params(k_params, cond_dim, mlp_dims)

    cond = {"state": state}
    q1 = jax.block_until_ready(critic_obs_forward(cond, params))
    assert q1.shape == (B, 1), q1.shape
    assert q1.dtype == jnp.float32

    # Pure-JAX reference.
    def ref_forward(x2d, p):
        def mish(v):
            return v * jnp.tanh(jax.nn.softplus(v))
        h = mish(x2d @ p["w1"] + p["b1"])
        h = mish(h @ p["w2"] + p["b2"])
        return h @ p["w3"] + p["b3"]

    ref = ref_forward(state.reshape(B, -1), params)
    assert jnp.allclose(q1, ref, atol=2e-5, rtol=2e-5), (q1, ref)

    # Exercise the multi-tile grid path (even grid split + a partial last tile) by
    # forcing a small row_tile.
    B2 = 600
    state2 = jax.random.normal(k_big, (B2, cond_dim), dtype=jnp.float32)
    q2 = jax.block_until_ready(critic_obs_forward(state2, params, row_tile=256))
    ref2 = ref_forward(state2, params)
    assert q2.shape == (B2, 1), q2.shape
    assert jnp.allclose(q2, ref2, atol=2e-5, rtol=2e-5)

    # Exercise the bf16 input path (looser tolerance by design).
    q3 = jax.block_until_ready(critic_obs_forward(state2, params, use_bf16=True))
    assert q3.shape == (B2, 1), q3.shape
    assert jnp.allclose(q3, ref2, atol=5e-2, rtol=5e-2)

    print("KERNEL_OK")
</pallas_src>

<mosaic_0001>
module attributes {stable_mosaic.version = 11 : i64} {
  func.func @critic_mlp_kernel(%arg0: i32, %arg1: memref<2x32xf32, #tpu.memory_space<vmem>>, %arg2: memref<32x128xf32, #tpu.memory_space<vmem>>, %arg3: memref<1x128xf32, #tpu.memory_space<vmem>>, %arg4: memref<128x128xf32, #tpu.memory_space<vmem>>, %arg5: memref<1x128xf32, #tpu.memory_space<vmem>>, %arg6: memref<1x128xf32, #tpu.memory_space<vmem>>, %arg7: memref<1x1xf32, #tpu.memory_space<vmem>>, %arg8: memref<1x1x2xf32, #tpu.memory_space<vmem>>) attributes {dimension_semantics = [#tpu.dimension_semantics<parallel>], iteration_bounds = array<i64: 1>, scalar_prefetch = 0 : i64, scratch_operands = 0 : i64, tpu.core_type = #tpu.core_type<tc>, window_params = [{transform_indices = @transform_0, window_bounds = array<i64: 2, 32>}, {pipeline_mode = #tpu.pipeline_mode<synchronous>, transform_indices = @transform_1, window_bounds = array<i64: 32, 128>}, {pipeline_mode = #tpu.pipeline_mode<synchronous>, transform_indices = @transform_2, window_bounds = array<i64: 1, 128>}, {pipeline_mode = #tpu.pipeline_mode<synchronous>, transform_indices = @transform_3, window_bounds = array<i64: 128, 128>}, {pipeline_mode = #tpu.pipeline_mode<synchronous>, transform_indices = @transform_4, window_bounds = array<i64: 1, 128>}, {pipeline_mode = #tpu.pipeline_mode<synchronous>, transform_indices = @transform_5, window_bounds = array<i64: 1, 128>}, {pipeline_mode = #tpu.pipeline_mode<synchronous>, transform_indices = @transform_6, window_bounds = array<i64: 1, 1>}, {transform_indices = @transform_7, window_bounds = array<i64: 1, 1, 2>}]} {
    %c0 = arith.constant 0 : index
    %c0_0 = arith.constant 0 : index
    %0 = vector.load %arg1[%c0, %c0_0] : memref<2x32xf32, #tpu.memory_space<vmem>>, vector<2x32xf32>
    %c0_1 = arith.constant 0 : index
    %c0_2 = arith.constant 0 : index
    %1 = vector.load %arg2[%c0_1, %c0_2] : memref<32x128xf32, #tpu.memory_space<vmem>>, vector<32x128xf32>
    %cst = arith.constant dense<0.000000e+00> : vector<2x128xf32>
    %2 = tpu.matmul %0, %1, %cst {dimension_numbers = #tpu.dot_dimension_numbers<[1], [0], [0], [1], [0, 0, 1, 1], [], []>} : vector<2x32xf32>, vector<32x128xf32>, vector<2x128xf32> -> vector<2x128xf32>
    %c0_3 = arith.constant 0 : index
    %c0_4 = arith.constant 0 : index
    %3 = vector.load %arg3[%c0_3, %c0_4] : memref<1x128xf32, #tpu.memory_space<vmem>>, vector<1x128xf32>
    %4 = vector.broadcast %3 : vector<1x128xf32> to vector<2x128xf32>
    %5 = arith.addf %2, %4 : vector<2x128xf32>
    %cst_5 = arith.constant 2.000000e+01 : f32
    %6 = vector.broadcast %cst_5 : f32 to vector<2x128xf32>
    %7 = arith.minimumf %5, %6 : vector<2x128xf32>
    %8 = math.exp %7 : vector<2x128xf32>
    %cst_6 = arith.constant 1.000000e+00 : f32
    %9 = vector.broadcast %cst_6 : f32 to vector<2x128xf32>
    %10 = arith.addf %9, %8 : vector<2x128xf32>
    %11 = arith.mulf %10, %10 : vector<2x128xf32>
    %cst_7 = arith.constant 1.000000e+00 : f32
    %12 = vector.broadcast %cst_7 : f32 to vector<2x128xf32>
    %13 = arith.subf %11, %12 : vector<2x128xf32>
    %14 = arith.mulf %5, %13 : vector<2x128xf32>
    %cst_8 = arith.constant 1.000000e+00 : f32
    %15 = vector.broadcast %cst_8 : f32 to vector<2x128xf32>
    %16 = arith.addf %11, %15 : vector<2x128xf32>
    %17 = arith.divf %14, %16 : vector<2x128xf32>
    %c0_9 = arith.constant 0 : index
    %c0_10 = arith.constant 0 : index
    %18 = vector.load %arg4[%c0_9, %c0_10] : memref<128x128xf32, #tpu.memory_space<vmem>>, vector<128x128xf32>
    %cst_11 = arith.constant dense<0.000000e+00> : vector<2x128xf32>
    %19 = tpu.matmul %17, %18, %cst_11 {dimension_numbers = #tpu.dot_dimension_numbers<[1], [0], [0], [1], [0, 0, 1, 1], [], []>} : vector<2x128xf32>, vector<128x128xf32>, vector<2x128xf32> -> vector<2x128xf32>
    %c0_12 = arith.constant 0 : index
    %c0_13 = arith.constant 0 : index
    %20 = vector.load %arg5[%c0_12, %c0_13] : memref<1x128xf32, #tpu.memory_space<vmem>>, vector<1x128xf32>
    %21 = vector.broadcast %20 : vector<1x128xf32> to vector<2x128xf32>
    %22 = arith.addf %19, %21 : vector<2x128xf32>
    %cst_14 = arith.constant 2.000000e+01 : f32
    %23 = vector.broadcast %cst_14 : f32 to vector<2x128xf32>
    %24 = arith.minimumf %22, %23 : vector<2x128xf32>
    %25 = math.exp %24 : vector<2x128xf32>
    %cst_15 = arith.constant 1.000000e+00 : f32
    %26 = vector.broadcast %cst_15 : f32 to vector<2x128xf32>
    %27 = arith.addf %26, %25 : vector<2x128xf32>
    %28 = arith.mulf %27, %27 : vector<2x128xf32>
    %cst_16 = arith.constant 1.000000e+00 : f32
    %29 = vector.broadcast %cst_16 : f32 to vector<2x128xf32>
    %30 = arith.subf %28, %29 : vector<2x128xf32>
    %31 = arith.mulf %22, %30 : vector<2x128xf32>
    %cst_17 = arith.constant 1.000000e+00 : f32
    %32 = vector.broadcast %cst_17 : f32 to vector<2x128xf32>
    %33 = arith.addf %28, %32 : vector<2x128xf32>
    %34 = arith.divf %31, %33 : vector<2x128xf32>
    %c0_18 = arith.constant 0 : index
    %c0_19 = arith.constant 0 : index
    %35 = vector.load %arg6[%c0_18, %c0_19] : memref<1x128xf32, #tpu.memory_space<vmem>>, vector<1x128xf32>
    %cst_20 = arith.constant dense<0.000000e+00> : vector<1x2xf32>
    %36 = tpu.matmul %35, %34, %cst_20 {dimension_numbers = #tpu.dot_dimension_numbers<[1], [1], [0], [0], [0, 0, 1, 0], [], []>} : vector<1x128xf32>, vector<2x128xf32>, vector<1x2xf32> -> vector<1x2xf32>
    %c0_21 = arith.constant 0 : index
    %c0_22 = arith.constant 0 : index
    %37 = vector.load %arg7[%c0_21, %c0_22] : memref<1x1xf32, #tpu.memory_space<vmem>>, vector<1x1xf32>
    %38 = vector.broadcast %37 : vector<1x1xf32> to vector<1x2xf32>
    %39 = arith.addf %36, %38 : vector<1x2xf32>
    %40 = vector.shape_cast %39 : vector<1x2xf32> to vector<1x1x2xf32>
    %c0_23 = arith.constant 0 : index
    %c0_24 = arith.constant 0 : index
    %c0_25 = arith.constant 0 : index
    %41 = vector.load %arg8[%c0_23, %c0_24, %c0_25] : memref<1x1x2xf32, #tpu.memory_space<vmem>>, vector<1x1x2xf32>
    tpu.vector_store %arg8[%c0_23, %c0_24, %c0_25], %40 {strides = array<i32>} : memref<1x1x2xf32, #tpu.memory_space<vmem>>, vector<1x1x2xf32>,
    return
  }
  func.func @transform_0(%arg0: i32) -> (i32, i32) {
    %c0_i32 = arith.constant 0 : i32
    %c0_i32_0 = arith.constant 0 : i32
    return %arg0, %c0_i32 : i32, i32
  }
  func.func @transform_1(%arg0: i32) -> (i32, i32) {
    %c0_i32 = arith.constant 0 : i32
    %c0_i32_0 = arith.constant 0 : i32
    %c0_i32_1 = arith.constant 0 : i32
    return %c0_i32, %c0_i32_0 : i32, i32
  }
  func.func @transform_2(%arg0: i32) -> (i32, i32) {
    %c0_i32 = arith.constant 0 : i32
    %c0_i32_0 = arith.constant 0 : i32
    %c0_i32_1 = arith.constant 0 : i32
    return %c0_i32, %c0_i32_0 : i32, i32
  }
  func.func @transform_3(%arg0: i32) -> (i32, i32) {
    %c0_i32 = arith.constant 0 : i32
    %c0_i32_0 = arith.constant 0 : i32
    %c0_i32_1 = arith.constant 0 : i32
    return %c0_i32, %c0_i32_0 : i32, i32
  }
  func.func @transform_4(%arg0: i32) -> (i32, i32) {
    %c0_i32 = arith.constant 0 : i32
    %c0_i32_0 = arith.constant 0 : i32
    %c0_i32_1 = arith.constant 0 : i32
    return %c0_i32, %c0_i32_0 : i32, i32
  }
  func.func @transform_5(%arg0: i32) -> (i32, i32) {
    %c0_i32 = arith.constant 0 : i32
    %c0_i32_0 = arith.constant 0 : i32
    %c0_i32_1 = arith.constant 0 : i32
    return %c0_i32, %c0_i32_0 : i32, i32
  }
  func.func @transform_6(%arg0: i32) -> (i32, i32) {
    %c0_i32 = arith.constant 0 : i32
    %c0_i32_0 = arith.constant 0 : i32
    %c0_i32_1 = arith.constant 0 : i32
    return %c0_i32, %c0_i32_0 : i32, i32
  }
  func.func @transform_7(%arg0: i32) -> (i32, i32, i32) {
    %c0_i32 = arith.constant 0 : i32
    %c0_i32_0 = arith.constant 0 : i32
    %c0_i32_1 = arith.constant 0 : i32
    return %arg0, %c0_i32, %c0_i32_0 : i32, i32, i32
  }
}

</mosaic_0001>

<llo_original>
// kernel: tpu_custom_call.1
$region0: #{tpu_custom_call.1}
  #allocation0 [shape = 'u32[]', space=smem, size = 0x4, offset = 0x4, fixed_abs, tag = 'smem constant byte address 0x4 - core index']
  #allocation1 [shape = 'u32[72,128]{1,0:T(1,128)}', space=vmem, size = 0x9000, scoped, tag = 'internal scratch']
  #allocation2 [shape = 'f32[1,1]{1,0:T(1,128)S(1)}', space=vmem, size = 0x200, scoped, tag = 'scoped memory for tpu_custom_call.1']
  %s0 = inlined_call_operand.vmem [shape: f32[2,32], index: 0, kind: input, shape index: {}]
  %s1 = inlined_call_operand.hbm [shape: f32[32,128], index: 1, kind: input, shape index: {}]
  %s2 = inlined_call_operand.vmem [shape: f32[1,128], index: 2, kind: input, shape index: {}]
  %s3 = inlined_call_operand.hbm [shape: f32[128,128], index: 3, kind: input, shape index: {}]
  %s4 = inlined_call_operand.vmem [shape: f32[1,128], index: 4, kind: input, shape index: {}]
  %s5 = inlined_call_operand.vmem [shape: f32[1,128], index: 5, kind: input, shape index: {}]
  %s6 = inlined_call_operand.<no memory space> [shape: f32[1,1], index: 6, kind: input, shape index: {}]
  %s7 = inlined_call_operand.hbm [shape: f32[1,1,2], index: 7, kind: output, shape index: {}]
  %s8 = sld [smem:[#allocation0]]
  $region46: #{tpu_custom_call.1} parent=0
    _
  %s10 = ssub.s32 1, %s8
  %s11 = scalar_select 0, %s10, %s8
  %v12 = vstv %s6
  %13 = vst [vmem:[#allocation2] sm:$0x1] %v12
  $region1: #{tpu_custom_call.1} parent=0
    #allocation3 [shape = 'u8[16384]{0}', space=vmem, size = 0x4000, scoped, tag = 'input window, operand 1, single buffered']
    #allocation4 [shape = 's32[1]{0}', space=sflag, size = 0x4, scoped, tag = 'scoped memory for tpu_custom_call.1']
    #allocation5 [shape = 's32[1]{0}', space=sflag, size = 0x4, scoped, tag = 'scoped memory for tpu_custom_call.1']
    #allocation6 [shape = 'u8[65536]{0}', space=vmem, size = 0x10000, scoped, tag = 'input window, operand 3, single buffered']
    #allocation7 [shape = 's32[1]{0}', space=sflag, size = 0x4, scoped, tag = 'scoped memory for tpu_custom_call.1']
    #allocation8 [shape = 'u8[512]{0}', space=vmem, size = 0x400, scoped, tag = 'output window, operand 0, single buffered']
    %14 = vsyncpa [#allocation4], 0
    %15 = vsyncpa [#allocation7], 0
    %16 = vsyncpa [#allocation5], 0
    // Predicated region
    $region2: #{tpu_custom_call.1} parent=1 // pred_check
      _
    $region3: #{tpu_custom_call.1} parent=1 // pred_check_branch
      %18 = sbr.rel (0) target = $region5
    $region4: #{tpu_custom_call.1} parent=1 // pred_region
      _
    $region5: #{tpu_custom_call.1} parent=1 // pred_fallthru
      _
    // Predicated region
    $region6: #{tpu_custom_call.1} parent=1 // pred_check
      _
    $region7: #{tpu_custom_call.1} parent=1 // pred_check_branch
      %20 = sbr.rel (0) target = $region9
    $region8: #{tpu_custom_call.1} parent=1 // pred_region
      %22 = vsyncadd [#allocation4], 0
      %s23 = sshll.u32 %s1, 4
      %s24 = int_to_ptr.hbm [resolvable:$true] %s23
      %s25 = sshll.u32 [#allocation3], 4
      %s26 = int_to_ptr.vmem [resolvable:$true] %s25
      %31 = dma.hbm_to_vmem [thread:$0]  %s24, 512, %s26, [#allocation4], 128, 128, 8
    $region9: #{tpu_custom_call.1} parent=1 // pred_fallthru
      _
    // Predicated region
    $region10: #{tpu_custom_call.1} parent=1 // pred_check
      _
    $region11: #{tpu_custom_call.1} parent=1 // pred_check_branch
      %33 = sbr.rel (0) target = $region13
    $region12: #{tpu_custom_call.1} parent=1 // pred_region
      _
    $region13: #{tpu_custom_call.1} parent=1 // pred_fallthru
      _
    // Predicated region
    $region14: #{tpu_custom_call.1} parent=1 // pred_check
      _
    $region15: #{tpu_custom_call.1} parent=1 // pred_check_branch
      %35 = sbr.rel (0) target = $region17
    $region16: #{tpu_custom_call.1} parent=1 // pred_region
      %37 = vsyncadd [#allocation7], 0
      %s38 = sshll.u32 %s3, 4
      %s39 = int_to_ptr.hbm [resolvable:$true] %s38
      %s40 = sshll.u32 [#allocation6], 4
      %s41 = int_to_ptr.vmem [resolvable:$true] %s40
      %46 = dma.hbm_to_vmem [thread:$0]  %s39, 2048, %s41, [#allocation7], 128, 128, 8
    $region17: #{tpu_custom_call.1} parent=1 // pred_fallthru
      _
    // Predicated region
    $region18: #{tpu_custom_call.1} parent=1 // pred_check
      _
    $region19: #{tpu_custom_call.1} parent=1 // pred_check_branch
      %48 = sbr.rel (0) target = $region21
    $region20: #{tpu_custom_call.1} parent=1 // pred_region
      _
    $region21: #{tpu_custom_call.1} parent=1 // pred_fallthru
      _
    // Predicated region
    $region22: #{tpu_custom_call.1} parent=1 // pred_check
      _
    $region23: #{tpu_custom_call.1} parent=1 // pred_check_branch
      %50 = sbr.rel (0) target = $region25
    $region24: #{tpu_custom_call.1} parent=1 // pred_region
      _
    $region25: #{tpu_custom_call.1} parent=1 // pred_fallthru
      _
    // Predicated region
    $region26: #{tpu_custom_call.1} parent=1 // pred_check
      _
    $region27: #{tpu_custom_call.1} parent=1 // pred_check_branch
      %52 = sbr.rel (0) target = $region29
    $region28: #{tpu_custom_call.1} parent=1 // pred_region
      _
    $region29: #{tpu_custom_call.1} parent=1 // pred_fallthru
      _
    // Predicated region
    $region30: #{tpu_custom_call.1} parent=1 // pred_check
      _
    $region31: #{tpu_custom_call.1} parent=1 // pred_check_branch
      %54 = sbr.rel (0) target = $region33
    $region32: #{tpu_custom_call.1} parent=1 // pred_region
      %56 = dma.done [#allocation4], 512
    $region33: #{tpu_custom_call.1} parent=1 // pred_fallthru
      _
    // Predicated region
    $region34: #{tpu_custom_call.1} parent=1 // pred_check
      _
    $region35: #{tpu_custom_call.1} parent=1 // pred_check_branch
      %58 = sbr.rel (0) target = $region37
    $region36: #{tpu_custom_call.1} parent=1 // pred_region
      %60 = dma.done [#allocation7], 2048
    $region37: #{tpu_custom_call.1} parent=1 // pred_fallthru
      _
    %v61 = vld [vmem:[%s0] sm:$0x3]
    %v62 = vld [vmem:[#allocation3] sm:$0xff]
    %v63 = vld [vmem:[#allocation3 + $0x8] sm:$0xff]
    %v64 = vld [vmem:[#allocation3 + $0x10] sm:$0xff]
    %v65 = vld [vmem:[#allocation3 + $0x18] sm:$0xff]
    %v66 = vld [vmem:[%s2] sm:$0x1]
    %v68 = vperm.slane %v66, 0
    %vm70 = vcmask 261120
    %v72 = vsel %vm70, %v61, 0
    %74 = vmatpush.msra.mxu0 0.0
    %75 = vmatpush.msra.mxu0 0.0
    %76 = vmatpush.msra.mxu0 0.0
    %77 = vmatpush.msra.mxu0 0.0
    %78 = vmatpush.msra.mxu0 0.0
    %79 = vmatpush.msra.mxu0 0.0
    %80 = vmatpush.msra.mxu0 0.0
    %81 = vmatpush.msra.mxu0 0.0
    %82 = vmatpush.msra.mxu0 0.0
    %83 = vmatpush.msra.mxu0 0.0
    %84 = vmatpush.msra.mxu0 0.0
    %85 = vmatpush.msra.mxu0 0.0
    %86 = vmatpush.msra.mxu0 %v65
    %87 = vmatpush.msra.mxu0 %v64
    %88 = vmatpush.msra.mxu0 %v63
    %89 = vmatpush.msra.mxu0 %v62
    %90 = vmatmul.f32.gmra.mxu0 %v72
    %v91 = vpop.f32.mrf.mxu0
    %v92 = vadd.f32 %v68, %v91
    %93 = vdwg.mxu0
    %v94 = vmin.f32 %v92, 20.0
    %v95 = vmul.f32 %v94, 1.442695
    %v96 = vpow.pop %v95
    %v97 = vadd.f32 %v96, 1.0
    %v98 = vmul.f32 %v97, %v97
    %v99 = vsub.f32 %v98, 1.0
    %v100 = vmul.f32 %v92, %v99
    %v101 = vadd.f32 %v98, 1.0
    %v102 = vrcp.pop %v101
    %v103 = vmul.f32 %v101, %v102
    %v104 = vsub.f32 1.0, %v103
    %v105 = vmul.f32 %v102, %v104
    %v106 = vadd.f32 %v102, %v105
    %vm107 = vweird.f32 %v101
    %vm108 = vweird.f32 %v102
    %vm109 = vmor %vm107, %vm108
    %v110 = vsel %vm109, %v102, %v106
    %v111 = vand.u32 2147483647, %v101
    %vm112 = vcmp.eq.f32.partialorder %v111, 8.507059e+37
    %v113 = vand.u32 %v101, 2147483648
    %v114 = vor.u32 1.1754944e-38, %v113
    %v115 = vsel %vm112, %v114, %v110
    %v116 = vmul.f32 %v100, %v115
    %v117 = vld [vmem:[#allocation6] sm:$0xff]
    %v118 = vld [vmem:[#allocation6 + $0x8] sm:$0xff]
    %v119 = vld [vmem:[#allocation6 + $0x10] sm:$0xff]
    %v120 = vld [vmem:[#allocation6 + $0x18] sm:$0xff]
    %v121 = vld [vmem:[#allocation6 + $0x20] sm:$0xff]
    %v122 = vld [vmem:[#allocation6 + $0x28] sm:$0xff]
    %v123 = vld [vmem:[#allocation6 + $0x30] sm:$0xff]
    %v124 = vld [vmem:[#allocation6 + $0x38] sm:$0xff]
    %v125 = vld [vmem:[#allocation6 + $0x40] sm:$0xff]
    %v126 = vld [vmem:[#allocation6 + $0x48] sm:$0xff]
    %v127 = vld [vmem:[#allocation6 + $0x50] sm:$0xff]
    %v128 = vld [vmem:[#allocation6 + $0x58] sm:$0xff]
    %v129 = vld [vmem:[#allocation6 + $0x60] sm:$0xff]
    %v130 = vld [vmem:[#allocation6 + $0x68] sm:$0xff]
    %v131 = vld [vmem:[#allocation6 + $0x70] sm:$0xff]
    %v132 = vld [vmem:[#allocation6 + $0x78] sm:$0xff]
    %v133 = vld [vmem:[%s4] sm:$0x1]
    %v135 = vperm.slane %v133, 0
    %137 = vmatpush.msra.mxu0 %v132
    %138 = vmatpush.msra.mxu0 %v131
    %139 = vmatpush.msra.mxu0 %v130
    %140 = vmatpush.msra.mxu0 %v129
    %141 = vmatpush.msra.mxu0 %v128
    %142 = vmatpush.msra.mxu0 %v127
    %143 = vmatpush.msra.mxu0 %v126
    %144 = vmatpush.msra.mxu0 %v125
    %145 = vmatpush.msra.mxu0 %v124
    %146 = vmatpush.msra.mxu0 %v123
    %147 = vmatpush.msra.mxu0 %v122
    %148 = vmatpush.msra.mxu0 %v121
    %149 = vmatpush.msra.mxu0 %v120
    %150 = vmatpush.msra.mxu0 %v119
    %151 = vmatpush.msra.mxu0 %v118
    %152 = vmatpush.msra.mxu0 %v117
    %153 = vmatmul.f32.gmra.mxu0 %v116
    %v154 = vpop.f32.mrf.mxu0
    %v155 = vadd.f32 %v135, %v154
    %156 = vdwg.mxu0
    %v157 = vmin.f32 %v155, 20.0
    %v158 = vmul.f32 %v157, 1.442695
    %v159 = vpow.pop %v158
    %v160 = vadd.f32 %v159, 1.0
    %v161 = vmul.f32 %v160, %v160
    %v162 = vsub.f32 %v161, 1.0
    %v163 = vmul.f32 %v155, %v162
    %v164 = vadd.f32 %v161, 1.0
    %v165 = vrcp.pop %v164
    %v166 = vmul.f32 %v164, %v165
    %v167 = vsub.f32 1.0, %v166
    %v168 = vmul.f32 %v165, %v167
    %v169 = vadd.f32 %v165, %v168
    %vm170 = vweird.f32 %v164
    %vm171 = vweird.f32 %v165
    %vm172 = vmor %vm170, %vm171
    %v173 = vsel %vm172, %v165, %v169
    %v174 = vand.u32 2147483647, %v164
    %vm175 = vcmp.eq.f32.partialorder %v174, 8.507059e+37
    %v176 = vand.u32 %v164, 2147483648
    %v177 = vor.u32 1.1754944e-38, %v176
    %v178 = vsel %vm175, %v177, %v173
    %v179 = vmul.f32 %v163, %v178
    %v180 = vld [vmem:[%s5] sm:$0x1]
    %v181 = vld [vmem:[#allocation2] sm:$0x1]
    %183 = vset.pattern.permute.xlu0 0
    %184 = vperm.xlu0 %183, %v181
    %v185 = vpop.permute.xlu0 %184
    %v187 = vperm.slane %v185, 0
    %188 = vmatpush.xpose.msra.mxu0 0.0
    %189 = vmatpush.xpose.msra.mxu0 0.0
    %190 = vmatpush.xpose.msra.mxu0 0.0
    %191 = vmatpush.xpose.msra.mxu0 0.0
    %192 = vmatpush.xpose.msra.mxu0 0.0
    %193 = vmatpush.xpose.msra.mxu0 0.0
    %194 = vmatpush.xpose.msra.mxu0 0.0
    %195 = vmatpush.xpose.msra.mxu0 0.0
    %196 = vmatpush.xpose.msra.mxu0 0.0
    %197 = vmatpush.xpose.msra.mxu0 0.0
    %198 = vmatpush.xpose.msra.mxu0 0.0
    %199 = vmatpush.xpose.msra.mxu0 0.0
    %200 = vmatpush.xpose.msra.mxu0 0.0
    %201 = vmatpush.xpose.msra.mxu0 0.0
    %202 = vmatpush.xpose.msra.mxu0 0.0
    %203 = vmatpush.xpose.msra.mxu0 %v179
    %204 = vmatmul.f32.gmra.mxu0 %v180
    %v205 = vpop.f32.mrf.mxu0
    %v206 = vadd.f32 %v187, %v205
    %207 = vdwg.mxu0
    %vm208 = vcmask 8192
    %209 = vst.msk [vmem:[#allocation8] sm:$0x1] %vm208, %v206
    // Predicated region
    $region38: #{tpu_custom_call.1} parent=1 // pred_check
      _
    $region39: #{tpu_custom_call.1} parent=1 // pred_check_branch
      %211 = sbr.rel (0) target = $region41
    $region40: #{tpu_custom_call.1} parent=1 // pred_region
      %213 = vsyncadd [#allocation5], 0
      %s215 = sshll.u32 [#allocation8], 4
      %s216 = int_to_ptr.vmem [resolvable:$true] %s215
      %s217 = sshll.u32 %s7, 4
      %s218 = int_to_ptr.hbm [resolvable:$true] %s217
      %220 = dma.vmem_to_hbm [thread:$0]  %s216, 16, %s218, [#allocation5]
    $region41: #{tpu_custom_call.1} parent=1 // pred_fallthru
      _
    // Predicated region
    $region42: #{tpu_custom_call.1} parent=1 // pred_check
      _
    $region43: #{tpu_custom_call.1} parent=1 // pred_check_branch
      %222 = sbr.rel (0) target = $region45
    $region44: #{tpu_custom_call.1} parent=1 // pred_region
      %224 = dma.done [#allocation5], 16
    $region45: #{tpu_custom_call.1} parent=1 // pred_fallthru
      _
    %225 = vsyncpa [#allocation4], 1
    %226 = vsyncpa [#allocation7], 1
    %227 = vsyncpa [#allocation5], 1

</llo_original>
